<compile_context>
chip_gen: v5e
topology: v5e:2x2
jax: 0.10.0
libtpu: 0.0.40
codegen_flags: <defaults>
</compile_context>

<pallas_src>
import jax
import jax.numpy as jnp
from jax.experimental import pallas as pl
from jax.experimental.pallas import tpu as pltpu


def mlp_kernel(x_ref, w1_ref, b1_ref, w2_ref, b2_ref, o_ref):
    # In-kernel cast to the weight dtype (bf16 path) — avoids a separate XLA
    # cast pass over x in HBM.
    x = x_ref[...].astype(w1_ref.dtype)
    # (TB, K) @ (K, H) on the MXU with f32 accumulation.
    h = jnp.dot(x, w1_ref[...], preferred_element_type=jnp.float32)
    # Bias add + ReLU in f32 on the VPU (biases always f32).
    h = jnp.maximum(h + b1_ref[...], 0.0)
    # (TB, H) @ (H, O), f32 accumulate.
    y = jnp.dot(h.astype(w2_ref.dtype), w2_ref[...],
                preferred_element_type=jnp.float32)
    o_ref[...] = (y + b2_ref[...]).astype(o_ref.dtype)


def _round_up(n, m):
    return ((n + m - 1) // m) * m


def prepare_params(w1, b1, w2, b2, *, use_bf16=True):
    """One-time parameter prep (cast weights, keep biases f32, shape (1, F))."""
    mm_dtype = jnp.bfloat16 if use_bf16 else w1.dtype
    return (w1.astype(mm_dtype),
            jnp.asarray(b1, jnp.float32).reshape(1, -1),
            w2.astype(mm_dtype),
            jnp.asarray(b2, jnp.float32).reshape(1, -1))


def _vmem_limit(need_bytes):
    """Generation-aware VMEM request with headroom for Mosaic scratch."""
    try:
        cap = int(pltpu.get_tpu_info().vmem_capacity_bytes)
    except Exception:
        cap = 64 * 1024 * 1024          # conservative (v7x per-TC size)
    ceiling = int(0.75 * cap)           # leave ~25% for compiler/internal scratch
    return int(min(max(int(1.5 * need_bytes), 16 * 1024 * 1024), ceiling))


def simple_nn_forward(x, params, *, block_b=256):
    """x: (B, K) f32; params = (w1 (K,H), b1 (1,H), w2 (H,O), b2 (1,O)) -> (B, O)."""
    w1, b1, w2, b2 = params
    out_dtype = x.dtype
    B, K = x.shape
    H = w1.shape[1]
    O = w2.shape[1]

    # ---- batch tiling (sublane-aligned; no feature-dim padding) --------------
    sub = 8                                   # x / out are f32 in HBM
    TB = max(sub, _round_up(min(block_b, B), sub))
    # Prefer >=2 grid steps so the "parallel" batch axis can split across the
    # two TensorCores on v7x (only when the batch permits).
    if _round_up(B, TB) // TB < 2 and B >= 2 * sub:
        TB = _round_up(pl.cdiv(B, 2), sub)
    B_p = _round_up(B, TB)
    n_tiles = B_p // TB

    x_p = x if B_p == B else jnp.pad(x, ((0, B_p - B), (0, 0)))

    # ---- VMEM budget: x/out tiles double-buffered, weights/biases resident ---
    mm_itemsize = jnp.dtype(w1.dtype).itemsize
    need = (2 * TB * K * jnp.dtype(x.dtype).itemsize      # streamed x tiles
            + 2 * TB * O * jnp.dtype(out_dtype).itemsize  # streamed out tiles
            + (K * H + H * O) * mm_itemsize                # resident weights (x1)
            + (H + O) * 4                                  # resident biases
            + TB * H * 4)                                  # f32 hidden working set
    vmem_limit = _vmem_limit(need)

    flops = 2 * B_p * (K * H + H * O)
    bytes_accessed = (x_p.size * jnp.dtype(x.dtype).itemsize
                      + (w1.size + w2.size) * mm_itemsize
                      + (b1.size + b2.size) * 4
                      + B_p * O * jnp.dtype(out_dtype).itemsize)

    out_p = pl.pallas_call(
        mlp_kernel,
        out_shape=jax.ShapeDtypeStruct((B_p, O), out_dtype),
        grid_spec=pl.GridSpec(
            grid=(n_tiles,),
            in_specs=[
                pl.BlockSpec((TB, K), lambda i: (i, 0)),   # x: streamed by batch tile
                pl.BlockSpec((K, H),  lambda i: (0, 0)),   # w1: VMEM-resident
                pl.BlockSpec((1, H),  lambda i: (0, 0)),   # b1
                pl.BlockSpec((H, O),  lambda i: (0, 0)),   # w2: VMEM-resident
                pl.BlockSpec((1, O),  lambda i: (0, 0)),   # b2
            ],
            out_specs=pl.BlockSpec((TB, O), lambda i: (i, 0)),
        ),
        compiler_params=pltpu.CompilerParams(
            dimension_semantics=("parallel",),   # batch tiles are independent
            vmem_limit_bytes=vmem_limit,
        ),
        cost_estimate=pl.CostEstimate(
            flops=flops, transcendentals=0, bytes_accessed=bytes_accessed),
    )(x_p, w1, b1, w2, b2)

    return out_p[:B]


if __name__ == "__main__":
    # Module hyperparameters (small, consistent with SimpleNN.__init__)
    batch = 8
    input_size = 32
    hidden_size = 128
    output_size = 16

    key = jax.random.PRNGKey(0)
    kx, k1, kb1, k2, kb2 = jax.random.split(key, 5)

    x = jax.random.normal(kx, (batch, input_size), dtype=jnp.float32)
    # Deterministic PyTorch-Linear-style uniform init: U(-1/sqrt(fan_in), 1/sqrt(fan_in))
    bound1 = 1.0 / (input_size ** 0.5)
    w1 = jax.random.uniform(k1, (input_size, hidden_size), jnp.float32, -bound1, bound1)
    b1 = jax.random.uniform(kb1, (1, hidden_size), jnp.float32, -bound1, bound1)
    bound2 = 1.0 / (hidden_size ** 0.5)
    w2 = jax.random.uniform(k2, (hidden_size, output_size), jnp.float32, -bound2, bound2)
    b2 = jax.random.uniform(kb2, (1, output_size), jnp.float32, -bound2, bound2)

    # Plain-JAX reference of the PyTorch forward.
    ref = jnp.maximum(x @ w1 + b1, 0.0) @ w2 + b2

    # Default bf16 MXU path (f32 accumulate + f32 bias/ReLU); looser tolerance.
    params_bf16 = prepare_params(w1, b1, w2, b2, use_bf16=True)
    out_bf16 = simple_nn_forward(x, params_bf16)
    jax.block_until_ready(out_bf16)
    assert out_bf16.shape == (batch, output_size)
    assert jnp.allclose(out_bf16, ref, atol=5e-2, rtol=5e-2)

    # f32 path (exact tolerance).
    params_f32 = prepare_params(w1, b1, w2, b2, use_bf16=False)
    out_f32 = simple_nn_forward(x, params_f32)
    jax.block_until_ready(out_f32)
    assert out_f32.shape == (batch, output_size)
    assert jnp.allclose(out_f32, ref, atol=1e-5, rtol=1e-5)

    print("KERNEL_OK")
</pallas_src>

<mosaic_0001>
module attributes {stable_mosaic.version = 11 : i64} {
  func.func @mlp_kernel(%arg0: i32, %arg1: memref<8x32xf32, #tpu.memory_space<vmem>>, %arg2: memref<32x128xbf16, #tpu.memory_space<vmem>>, %arg3: memref<1x128xf32, #tpu.memory_space<vmem>>, %arg4: memref<128x16xbf16, #tpu.memory_space<vmem>>, %arg5: memref<1x16xf32, #tpu.memory_space<vmem>>, %arg6: memref<8x16xf32, #tpu.memory_space<vmem>>) attributes {dimension_semantics = [#tpu.dimension_semantics<parallel>], iteration_bounds = array<i64: 1>, scalar_prefetch = 0 : i64, scratch_operands = 0 : i64, tpu.core_type = #tpu.core_type<tc>, window_params = [{transform_indices = @transform_0, window_bounds = array<i64: 8, 32>}, {pipeline_mode = #tpu.pipeline_mode<synchronous>, transform_indices = @transform_1, window_bounds = array<i64: 32, 128>}, {pipeline_mode = #tpu.pipeline_mode<synchronous>, transform_indices = @transform_2, window_bounds = array<i64: 1, 128>}, {pipeline_mode = #tpu.pipeline_mode<synchronous>, transform_indices = @transform_3, window_bounds = array<i64: 128, 16>}, {pipeline_mode = #tpu.pipeline_mode<synchronous>, transform_indices = @transform_4, window_bounds = array<i64: 1, 16>}, {transform_indices = @transform_5, window_bounds = array<i64: 8, 16>}]} {
    %c0 = arith.constant 0 : index
    %c0_0 = arith.constant 0 : index
    %0 = vector.load %arg1[%c0, %c0_0] : memref<8x32xf32, #tpu.memory_space<vmem>>, vector<8x32xf32>
    %1 = arith.truncf %0 : vector<8x32xf32> to vector<8x32xbf16>
    %c0_1 = arith.constant 0 : index
    %c0_2 = arith.constant 0 : index
    %2 = vector.load %arg2[%c0_1, %c0_2] : memref<32x128xbf16, #tpu.memory_space<vmem>>, vector<32x128xbf16>
    %cst = arith.constant dense<0.000000e+00> : vector<8x128xf32>
    %3 = tpu.matmul %1, %2, %cst {dimension_numbers = #tpu.dot_dimension_numbers<[1], [0], [0], [1], [0, 0, 1, 1], [], []>} : vector<8x32xbf16>, vector<32x128xbf16>, vector<8x128xf32> -> vector<8x128xf32>
    %c0_3 = arith.constant 0 : index
    %c0_4 = arith.constant 0 : index
    %4 = vector.load %arg3[%c0_3, %c0_4] : memref<1x128xf32, #tpu.memory_space<vmem>>, vector<1x128xf32>
    %5 = vector.broadcast %4 : vector<1x128xf32> to vector<8x128xf32>
    %6 = arith.addf %3, %5 : vector<8x128xf32>
    %cst_5 = arith.constant 0.000000e+00 : f32
    %7 = vector.broadcast %cst_5 : f32 to vector<8x128xf32>
    %8 = arith.maximumf %6, %7 : vector<8x128xf32>
    %9 = arith.truncf %8 : vector<8x128xf32> to vector<8x128xbf16>
    %c0_6 = arith.constant 0 : index
    %c0_7 = arith.constant 0 : index
    %10 = vector.load %arg4[%c0_6, %c0_7] : memref<128x16xbf16, #tpu.memory_space<vmem>>, vector<128x16xbf16>
    %cst_8 = arith.constant dense<0.000000e+00> : vector<8x16xf32>
    %11 = tpu.matmul %9, %10, %cst_8 {dimension_numbers = #tpu.dot_dimension_numbers<[1], [0], [0], [1], [0, 0, 1, 1], [], []>} : vector<8x128xbf16>, vector<128x16xbf16>, vector<8x16xf32> -> vector<8x16xf32>
    %c0_9 = arith.constant 0 : index
    %c0_10 = arith.constant 0 : index
    %12 = vector.load %arg5[%c0_9, %c0_10] : memref<1x16xf32, #tpu.memory_space<vmem>>, vector<1x16xf32>
    %13 = vector.broadcast %12 : vector<1x16xf32> to vector<8x16xf32>
    %14 = arith.addf %11, %13 : vector<8x16xf32>
    %c0_11 = arith.constant 0 : index
    %c0_12 = arith.constant 0 : index
    %15 = vector.load %arg6[%c0_11, %c0_12] : memref<8x16xf32, #tpu.memory_space<vmem>>, vector<8x16xf32>
    tpu.vector_store %arg6[%c0_11, %c0_12], %14 {strides = array<i32>} : memref<8x16xf32, #tpu.memory_space<vmem>>, vector<8x16xf32>,
    return
  }
  func.func @transform_0(%arg0: i32) -> (i32, i32) {
    %c0_i32 = arith.constant 0 : i32
    %c0_i32_0 = arith.constant 0 : i32
    return %arg0, %c0_i32 : i32, i32
  }
  func.func @transform_1(%arg0: i32) -> (i32, i32) {
    %c0_i32 = arith.constant 0 : i32
    %c0_i32_0 = arith.constant 0 : i32
    %c0_i32_1 = arith.constant 0 : i32
    return %c0_i32, %c0_i32_0 : i32, i32
  }
  func.func @transform_2(%arg0: i32) -> (i32, i32) {
    %c0_i32 = arith.constant 0 : i32
    %c0_i32_0 = arith.constant 0 : i32
    %c0_i32_1 = arith.constant 0 : i32
    return %c0_i32, %c0_i32_0 : i32, i32
  }
  func.func @transform_3(%arg0: i32) -> (i32, i32) {
    %c0_i32 = arith.constant 0 : i32
    %c0_i32_0 = arith.constant 0 : i32
    %c0_i32_1 = arith.constant 0 : i32
    return %c0_i32, %c0_i32_0 : i32, i32
  }
  func.func @transform_4(%arg0: i32) -> (i32, i32) {
    %c0_i32 = arith.constant 0 : i32
    %c0_i32_0 = arith.constant 0 : i32
    %c0_i32_1 = arith.constant 0 : i32
    return %c0_i32, %c0_i32_0 : i32, i32
  }
  func.func @transform_5(%arg0: i32) -> (i32, i32) {
    %c0_i32 = arith.constant 0 : i32
    %c0_i32_0 = arith.constant 0 : i32
    return %arg0, %c0_i32 : i32, i32
  }
}

</mosaic_0001>

<llo_original>
// kernel: tpu_custom_call.1
$region0: #{tpu_custom_call.1}
  #allocation0 [shape = 'u32[]', space=smem, size = 0x4, offset = 0x4, fixed_abs, tag = 'smem constant byte address 0x4 - core index']
  #allocation1 [shape = 'u32[72,128]{1,0:T(1,128)}', space=vmem, size = 0x9000, scoped, tag = 'internal scratch']
  %s0 = inlined_call_operand.vmem [shape: f32[8,32], index: 0, kind: input, shape index: {}]
  %s1 = inlined_call_operand.vmem [shape: bf16[32,128], index: 1, kind: input, shape index: {}]
  %s2 = inlined_call_operand.vmem [shape: f32[1,128], index: 2, kind: input, shape index: {}]
  %s3 = inlined_call_operand.vmem [shape: bf16[128,16], index: 3, kind: input, shape index: {}]
  %s4 = inlined_call_operand.vmem [shape: f32[1,16], index: 4, kind: input, shape index: {}]
  %s5 = inlined_call_operand.hbm [shape: f32[8,16], index: 5, kind: output, shape index: {}]
  %s6 = sld [smem:[#allocation0]]
  $region30: #{tpu_custom_call.1} parent=0
    _
  %s8 = ssub.s32 1, %s6
  %s9 = scalar_select 0, %s8, %s6
  $region1: #{tpu_custom_call.1} parent=0
    #allocation2 [shape = 'u8[4096]{0}', space=vmem, size = 0x1000, scoped, tag = 'output window, operand 0, single buffered']
    #allocation3 [shape = 's32[1]{0}', space=sflag, size = 0x4, scoped, tag = 'scoped memory for tpu_custom_call.1']
    %10 = vsyncpa [#allocation3], 0
    // Predicated region
    $region2: #{tpu_custom_call.1} parent=1 // pred_check
      _
    $region3: #{tpu_custom_call.1} parent=1 // pred_check_branch
      %12 = sbr.rel (0) target = $region5
    $region4: #{tpu_custom_call.1} parent=1 // pred_region
      _
    $region5: #{tpu_custom_call.1} parent=1 // pred_fallthru
      _
    // Predicated region
    $region6: #{tpu_custom_call.1} parent=1 // pred_check
      _
    $region7: #{tpu_custom_call.1} parent=1 // pred_check_branch
      %14 = sbr.rel (0) target = $region9
    $region8: #{tpu_custom_call.1} parent=1 // pred_region
      _
    $region9: #{tpu_custom_call.1} parent=1 // pred_fallthru
      _
    // Predicated region
    $region10: #{tpu_custom_call.1} parent=1 // pred_check
      _
    $region11: #{tpu_custom_call.1} parent=1 // pred_check_branch
      %16 = sbr.rel (0) target = $region13
    $region12: #{tpu_custom_call.1} parent=1 // pred_region
      _
    $region13: #{tpu_custom_call.1} parent=1 // pred_fallthru
      _
    // Predicated region
    $region14: #{tpu_custom_call.1} parent=1 // pred_check
      _
    $region15: #{tpu_custom_call.1} parent=1 // pred_check_branch
      %18 = sbr.rel (0) target = $region17
    $region16: #{tpu_custom_call.1} parent=1 // pred_region
      _
    $region17: #{tpu_custom_call.1} parent=1 // pred_fallthru
      _
    // Predicated region
    $region18: #{tpu_custom_call.1} parent=1 // pred_check
      _
    $region19: #{tpu_custom_call.1} parent=1 // pred_check_branch
      %20 = sbr.rel (0) target = $region21
    $region20: #{tpu_custom_call.1} parent=1 // pred_region
      _
    $region21: #{tpu_custom_call.1} parent=1 // pred_fallthru
      _
    %v22 = vld [vmem:[%s0] sm:$0xff]
    %v23 = vpack.c.bf16 %v22, %v22
    %v24 = vld [vmem:[%s1] sm:$0xf]
    %v25 = vld [vmem:[%s1 + $0x4] sm:$0xf]
    %v26 = vld [vmem:[%s1 + $0x8] sm:$0xf]
    %v27 = vld [vmem:[%s1 + $0xc] sm:$0xf]
    %v28 = vld [vmem:[%s2] sm:$0x1]
    %v30 = vperm.slane %v28, 0
    %v36 = vunpack.c.l.b16 %v24
    %v37 = vunpack.c.l.b16 %v25
    %v38 = vunpack.c.l.b16 %v26
    %v39 = vunpack.c.l.b16 %v27
    %v40 = vpack.c.b16 %v37, %v36
    %v41 = vpack.c.b16 %v39, %v38
    %vm44 = vcmask 261120
    %v46 = vsel %vm44, %v23, 0
    %48 = vmatpush.bf16.msra.mxu0 0
    %49 = vmatpush.bf16.msra.mxu0 0
    %50 = vmatpush.bf16.msra.mxu0 0
    %51 = vmatpush.bf16.msra.mxu0 0
    %52 = vmatpush.bf16.msra.mxu0 0
    %53 = vmatpush.bf16.msra.mxu0 0
    %54 = vmatpush.bf16.msra.mxu0 %v41
    %55 = vmatpush.bf16.msra.mxu0 %v40
    %56 = vmatmul.bf16.gmra.mxu0 %v46
    %v57 = vpop.f32.mrf.mxu0
    %v58 = vadd.f32 %v30, %v57
    %v59 = vpop.f32.mrf.mxu0
    %60 = vdwg.mxu0
    %v61 = vmax.f32 %v58, 0.0
    %v62 = vpack.c.bf16 %v61, %v61
    %v63 = vld [vmem:[%s3] sm:$0xf]
    %v64 = vld [vmem:[%s3 + $0x4] sm:$0xf]
    %v65 = vld [vmem:[%s3 + $0x8] sm:$0xf]
    %v66 = vld [vmem:[%s3 + $0xc] sm:$0xf]
    %v67 = vld [vmem:[%s3 + $0x10] sm:$0xf]
    %v68 = vld [vmem:[%s3 + $0x14] sm:$0xf]
    %v69 = vld [vmem:[%s3 + $0x18] sm:$0xf]
    %v70 = vld [vmem:[%s3 + $0x1c] sm:$0xf]
    %v71 = vld [vmem:[%s3 + $0x20] sm:$0xf]
    %v72 = vld [vmem:[%s3 + $0x24] sm:$0xf]
    %v73 = vld [vmem:[%s3 + $0x28] sm:$0xf]
    %v74 = vld [vmem:[%s3 + $0x2c] sm:$0xf]
    %v75 = vld [vmem:[%s3 + $0x30] sm:$0xf]
    %v76 = vld [vmem:[%s3 + $0x34] sm:$0xf]
    %v77 = vld [vmem:[%s3 + $0x38] sm:$0xf]
    %v78 = vld [vmem:[%s3 + $0x3c] sm:$0xf]
    %v79 = vld [vmem:[%s4] sm:$0x1]
    %v81 = vperm.slane %v79, 0
    %v99 = vunpack.c.l.b16 %v63
    %v100 = vunpack.c.l.b16 %v64
    %v101 = vunpack.c.l.b16 %v65
    %v102 = vunpack.c.l.b16 %v66
    %v103 = vunpack.c.l.b16 %v67
    %v104 = vunpack.c.l.b16 %v68
    %v105 = vunpack.c.l.b16 %v69
    %v106 = vunpack.c.l.b16 %v70
    %v107 = vunpack.c.l.b16 %v71
    %v108 = vunpack.c.l.b16 %v72
    %v109 = vunpack.c.l.b16 %v73
    %v110 = vunpack.c.l.b16 %v74
    %v111 = vunpack.c.l.b16 %v75
    %v112 = vunpack.c.l.b16 %v76
    %v113 = vunpack.c.l.b16 %v77
    %v114 = vunpack.c.l.b16 %v78
    %v115 = vpack.c.b16 %v100, %v99
    %v116 = vpack.c.b16 %v102, %v101
    %v117 = vpack.c.b16 %v104, %v103
    %v118 = vpack.c.b16 %v106, %v105
    %v119 = vpack.c.b16 %v108, %v107
    %v120 = vpack.c.b16 %v110, %v109
    %v121 = vpack.c.b16 %v112, %v111
    %v122 = vpack.c.b16 %v114, %v113
    %131 = vmatpush.bf16.msra.mxu0 %v122
    %132 = vmatpush.bf16.msra.mxu0 %v121
    %133 = vmatpush.bf16.msra.mxu0 %v120
    %134 = vmatpush.bf16.msra.mxu0 %v119
    %135 = vmatpush.bf16.msra.mxu0 %v118
    %136 = vmatpush.bf16.msra.mxu0 %v117
    %137 = vmatpush.bf16.msra.mxu0 %v116
    %138 = vmatpush.bf16.msra.mxu0 %v115
    %139 = vmatmul.bf16.gmra.mxu0 %v62
    %v140 = vpop.f32.mrf.mxu0
    %v141 = vadd.f32 %v81, %v140
    %v142 = vpop.f32.mrf.mxu0
    %143 = vdwg.mxu0
    %vm144 = vcmask 130048
    %145 = vst.msk [vmem:[#allocation2] sm:$0xff] %vm144, %v141
    // Predicated region
    $region22: #{tpu_custom_call.1} parent=1 // pred_check
      _
    $region23: #{tpu_custom_call.1} parent=1 // pred_check_branch
      %147 = sbr.rel (0) target = $region25
    $region24: #{tpu_custom_call.1} parent=1 // pred_region
      %149 = vsyncadd [#allocation3], 0
      %s151 = sshll.u32 [#allocation2], 4
      %s152 = int_to_ptr.vmem [resolvable:$true] %s151
      %s153 = sshll.u32 %s5, 4
      %s154 = int_to_ptr.hbm [resolvable:$true] %s153
      %156 = dma.vmem_to_hbm [thread:$0]  %s152, 128, %s154, [#allocation3]
    $region25: #{tpu_custom_call.1} parent=1 // pred_fallthru
      _
    // Predicated region
    $region26: #{tpu_custom_call.1} parent=1 // pred_check
      _
    $region27: #{tpu_custom_call.1} parent=1 // pred_check_branch
      %158 = sbr.rel (0) target = $region29
    $region28: #{tpu_custom_call.1} parent=1 // pred_region
      %160 = dma.done [#allocation3], 128
    $region29: #{tpu_custom_call.1} parent=1 // pred_fallthru
      _
    %161 = vsyncpa [#allocation3], 1

</llo_original>
